<compile_context>
chip_gen: v7x
topology: tpu7x:2x2x1
jax: 0.10.0
libtpu: 0.0.40
codegen_flags: <defaults>
</compile_context>

<pallas_src>
import functools
import math

import jax
import jax.numpy as jnp
from jax import lax
from jax.experimental import pallas as pl
from jax.experimental.pallas import tpu as pltpu


def _round_up(x, m):
    return ((x + m - 1) // m) * m


def _calf_loss_kernel(params_ref, labels_ref, output_ref, partial_ref, *,
                      total_valid, tile_rows, lanes, log_miss, log_hit,
                      need_tail_mask, need_lane_mask):
    # params rows: K0, K1, K2, K3, 1/(K1-K0), 1/K2, 1/(K2-K3), lane_valid
    K0 = params_ref[0:1, :]
    K1 = params_ref[1:2, :]
    K2 = params_ref[2:3, :]
    K3 = params_ref[3:4, :]
    inv10 = params_ref[4:5, :]
    inv2 = params_ref[5:6, :]
    inv23 = params_ref[6:7, :]
    lane_valid = params_ref[7:8, :]

    x = labels_ref[...].astype(jnp.float32)          # (tile_rows, lanes)
    out_f = output_ref[...].astype(jnp.float32)       # original prediction
    op = 1.0 - out_f                                   # torch: output = 1 - output

    # Mutually exclusive case masks (sign-based steps == strict "<" / ">=").
    is2 = (x >= K0) & (x < K1)
    is3 = (x >= K1) & (x < 0.0)
    is4 = (x >= 0.0) & (x < K2)
    is5 = (x >= K2) & (x < K3)
    # case1 (x < K0) and case6 (x >= K3) share arg = op and fall through below.

    # Within each case the PartialIdentity clamp is the identity, so drop it.
    arg2 = op + out_f * ((x - K0) * inv10)
    arg4 = out_f + op * (x * inv2)
    arg5 = op + out_f * ((x - K3) * inv23)

    arg = jnp.where(is2, arg2, jnp.where(is4, arg4, jnp.where(is5, arg5, op)))
    base = jnp.where(is4, log_hit, log_miss)

    raw = jnp.maximum(0.0, base - jnp.log(arg))        # single EUP log / element

    # Zero out case3 (identically 0) and padded / out-of-range elements.
    zero_mask = is3
    if need_lane_mask:
        zero_mask = zero_mask | (lane_valid <= 0.0)
    if need_tail_mask:
        row = lax.broadcasted_iota(jnp.int32, (tile_rows, lanes), 0) \
            + pl.program_id(0) * tile_rows
        lane = lax.broadcasted_iota(jnp.int32, (tile_rows, lanes), 1)
        flat = row * lanes + lane
        zero_mask = zero_mask | (flat >= total_valid)

    L = jnp.where(zero_mask, 0.0, raw)

    # Per-block partial sum: fold rows into one (8, lanes) vreg (pure VALU
    # adds); the final cross-lane reduce happens once, outside the kernel.
    partial = jnp.sum(L.reshape(tile_rows // 8, 8, lanes), axis=0)
    partial_ref[...] = partial.reshape(1, 8, lanes)


def context_aware_loss(labels, output, K, hit_radius=0.1, miss_radius=0.9):
    """labels, output: (B, T, C) float; K: (4, C) float (already * framerate)."""
    B, T, C = labels.shape
    if not jnp.issubdtype(labels.dtype, jnp.floating):
        labels = labels.astype(jnp.float32)
    if not jnp.issubdtype(output.dtype, jnp.floating):
        output = output.astype(jnp.float32)
    K = jnp.asarray(K, jnp.float32)

    # ---- lane geometry: class axis mapped densely onto the 128-lane axis ----
    if C <= 128:
        c_pad = pl.next_power_of_2(C)     # divides 128
        lanes = 128
    else:
        c_pad = _round_up(C, 128)
        lanes = c_pad

    # ---- pack K, reciprocals, lane-validity into a single (8, lanes) vreg ----
    if c_pad > C:
        # Benign, well-ordered boundaries for padded (masked-out) classes.
        extra = jnp.tile(jnp.array([[-2.0], [-1.0], [1.0], [2.0]], jnp.float32),
                         (1, c_pad - C))
        K_p = jnp.concatenate([K, extra], axis=1)
        lane_valid_c = jnp.concatenate(
            [jnp.ones((C,), jnp.float32), jnp.zeros((c_pad - C,), jnp.float32)])
    else:
        K_p = K
        lane_valid_c = jnp.ones((C,), jnp.float32)

    reps = lanes // c_pad
    K_lane = jnp.tile(K_p, (1, reps))                       # (4, lanes)
    lane_valid = jnp.tile(lane_valid_c, (reps,))            # (lanes,)
    inv10 = 1.0 / (K_lane[1] - K_lane[0])
    inv2 = 1.0 / K_lane[2]
    inv23 = 1.0 / (K_lane[2] - K_lane[3])
    params = jnp.stack([K_lane[0], K_lane[1], K_lane[2], K_lane[3],
                        inv10, inv2, inv23, lane_valid])    # (8, lanes)

    # ---- flatten data lane-dense, pad class dim and flat tail ----
    lab = labels.reshape(B * T, C)
    out = output.reshape(B * T, C)
    if c_pad > C:
        lab = jnp.pad(lab, ((0, 0), (0, c_pad - C)), constant_values=0.0)
        out = jnp.pad(out, ((0, 0), (0, c_pad - C)), constant_values=0.5)
    total_valid = B * T * c_pad

    R = (total_valid + lanes - 1) // lanes
    # ~1 MiB f32 per input block, multiple of 8 sublanes.
    max_rows = max(8, ((2048 * 128) // lanes) // 8 * 8)
    if R > max_rows:
        tile_rows = max_rows
    else:
        tile_rows = _round_up(max(R, 1), 8)
    R_pad = _round_up(R, tile_rows)
    num_blocks = R_pad // tile_rows

    lab_flat = lab.reshape(-1)
    out_flat = out.reshape(-1)
    pad_amount = R_pad * lanes - total_valid
    if pad_amount:
        lab_flat = jnp.pad(lab_flat, (0, pad_amount), constant_values=0.0)
        out_flat = jnp.pad(out_flat, (0, pad_amount), constant_values=0.5)
    labels2 = lab_flat.reshape(R_pad, lanes)
    output2 = out_flat.reshape(R_pad, lanes)

    kernel = functools.partial(
        _calf_loss_kernel,
        total_valid=total_valid,
        tile_rows=tile_rows,
        lanes=lanes,
        log_miss=float(math.log(miss_radius)),
        log_hit=float(math.log(1.0 - hit_radius)),
        need_tail_mask=(R_pad * lanes != total_valid),
        need_lane_mask=(c_pad != C),
    )

    partials = pl.pallas_call(
        kernel,
        out_shape=jax.ShapeDtypeStruct((num_blocks, 8, lanes), jnp.float32),
        grid=(num_blocks,),
        in_specs=[
            pl.BlockSpec((8, lanes), lambda i: (0, 0)),          # params
            pl.BlockSpec((tile_rows, lanes), lambda i: (i, 0)),  # labels
            pl.BlockSpec((tile_rows, lanes), lambda i: (i, 0)),  # output
        ],
        out_specs=pl.BlockSpec((1, 8, lanes), lambda i: (i, 0, 0)),
        compiler_params=pltpu.CompilerParams(
            dimension_semantics=("parallel",)),
    )(params, labels2, output2)

    # Tiny final reduction of per-block partial sums.
    return jnp.sum(partials)


def _reference_loss(labels, output, K, hit_radius=0.1, miss_radius=0.9):
    """Pure-JAX reference mirroring the PyTorch forward exactly."""
    def up(x, a):
        return 1.0 - jnp.maximum(0.0 * x, jnp.sign(a - x))

    def down(x, a):
        return jnp.maximum(0.0 * x, jnp.sign(a - x))

    def interval(x, a, b):
        return up(x, a) * down(x, b)

    def pid(x, a, b):
        return jnp.minimum(jnp.maximum(x, 0.0 * x + a), 0.0 * x + b)

    K0, K1, K2, K3 = K[0], K[1], K[2], K[3]
    out = 1.0 - output
    zeros = jnp.zeros_like(out)
    lm = jnp.log(zeros + miss_radius)
    lh = jnp.log(zeros + 1.0 - hit_radius)
    c1 = down(labels, K0) * jnp.maximum(zeros, -jnp.log(out) + lm)
    c2 = interval(labels, K0, K1) * jnp.maximum(
        zeros, -jnp.log(out + (1.0 - out) * (pid(labels, K0, K1) - K0) / (K1 - K0)) + lm)
    c3 = interval(labels, K1, 0.0) * zeros
    c4 = interval(labels, 0.0, K2) * jnp.maximum(
        zeros, -jnp.log(1.0 - out + out * (pid(labels, 0.0, K2) - 0.0) / (K2 - 0.0)) + lh)
    c5 = interval(labels, K2, K3) * jnp.maximum(
        zeros, -jnp.log(out + (1.0 - out) * (pid(labels, K2, K3) - K3) / (K2 - K3)) + lm)
    c6 = up(labels, K3) * jnp.maximum(zeros, -jnp.log(out) + lm)
    return jnp.sum(c1 + c2 + c3 + c4 + c5 + c6)


if __name__ == "__main__":
    # Small, deterministic shapes: batch=2, chunk frames T=8, classes C=16.
    B, T, C = 2, 8, 16
    framerate = 2

    # Per-class context boundaries (frames), scaled by framerate as in __init__.
    K_base = jnp.stack([
        jnp.full((C,), -40.0),
        jnp.full((C,), -20.0),
        jnp.full((C,), 20.0),
        jnp.full((C,), 40.0),
    ])  # (4, C)
    K = K_base * framerate

    key = jax.random.PRNGKey(0)
    k_lab, k_out = jax.random.split(key)
    labels = jax.random.uniform(k_lab, (B, T, C), minval=-120.0, maxval=120.0)
    output = jax.nn.sigmoid(jax.random.normal(k_out, (B, T, C)))

    loss = context_aware_loss(labels, output, K)
    loss = jax.block_until_ready(loss)

    ref = _reference_loss(labels.astype(jnp.float32),
                          output.astype(jnp.float32), K.astype(jnp.float32))
    assert jnp.isfinite(loss), "loss is not finite"
    assert jnp.allclose(loss, ref, rtol=1e-4, atol=1e-3), (loss, ref)
    print("KERNEL_OK")
</pallas_src>

<mosaic_0001>
module attributes {stable_mosaic.version = 11 : i64} {
  func.func @_calf_loss_kernel(%arg0: i32, %arg1: memref<8x128xf32, #tpu.memory_space<vmem>>, %arg2: memref<8x128xf32, #tpu.memory_space<vmem>>, %arg3: memref<8x128xf32, #tpu.memory_space<vmem>>, %arg4: memref<1x8x128xf32, #tpu.memory_space<vmem>>) attributes {dimension_semantics = [#tpu.dimension_semantics<parallel>], iteration_bounds = array<i64: 1>, scalar_prefetch = 0 : i64, scratch_operands = 0 : i64, tpu.core_type = #tpu.core_type<tc>, window_params = [{pipeline_mode = #tpu.pipeline_mode<synchronous>, transform_indices = @transform_0, window_bounds = array<i64: 8, 128>}, {transform_indices = @transform_1, window_bounds = array<i64: 8, 128>}, {transform_indices = @transform_2, window_bounds = array<i64: 8, 128>}, {transform_indices = @transform_3, window_bounds = array<i64: 1, 8, 128>}]} {
    %c0 = arith.constant 0 : index
    %c0_0 = arith.constant 0 : index
    %0 = vector.load %arg1[%c0, %c0_0] : memref<8x128xf32, #tpu.memory_space<vmem>>, vector<1x128xf32>
    %c1 = arith.constant 1 : index
    %c0_1 = arith.constant 0 : index
    %1 = vector.load %arg1[%c1, %c0_1] : memref<8x128xf32, #tpu.memory_space<vmem>>, vector<1x128xf32>
    %c2 = arith.constant 2 : index
    %c0_2 = arith.constant 0 : index
    %2 = vector.load %arg1[%c2, %c0_2] : memref<8x128xf32, #tpu.memory_space<vmem>>, vector<1x128xf32>
    %c3 = arith.constant 3 : index
    %c0_3 = arith.constant 0 : index
    %3 = vector.load %arg1[%c3, %c0_3] : memref<8x128xf32, #tpu.memory_space<vmem>>, vector<1x128xf32>
    %c4 = arith.constant 4 : index
    %c0_4 = arith.constant 0 : index
    %4 = vector.load %arg1[%c4, %c0_4] : memref<8x128xf32, #tpu.memory_space<vmem>>, vector<1x128xf32>
    %c5 = arith.constant 5 : index
    %c0_5 = arith.constant 0 : index
    %5 = vector.load %arg1[%c5, %c0_5] : memref<8x128xf32, #tpu.memory_space<vmem>>, vector<1x128xf32>
    %c6 = arith.constant 6 : index
    %c0_6 = arith.constant 0 : index
    %6 = vector.load %arg1[%c6, %c0_6] : memref<8x128xf32, #tpu.memory_space<vmem>>, vector<1x128xf32>
    %c0_7 = arith.constant 0 : index
    %c0_8 = arith.constant 0 : index
    %7 = vector.load %arg2[%c0_7, %c0_8] : memref<8x128xf32, #tpu.memory_space<vmem>>, vector<8x128xf32>
    %c0_9 = arith.constant 0 : index
    %c0_10 = arith.constant 0 : index
    %8 = vector.load %arg3[%c0_9, %c0_10] : memref<8x128xf32, #tpu.memory_space<vmem>>, vector<8x128xf32>
    %cst = arith.constant 1.000000e+00 : f32
    %9 = vector.broadcast %cst : f32 to vector<8x128xf32>
    %10 = arith.subf %9, %8 : vector<8x128xf32>
    %11 = vector.broadcast %0 : vector<1x128xf32> to vector<8x128xf32>
    %12 = arith.cmpf oge, %7, %11 : vector<8x128xf32>
    %13 = vector.broadcast %1 : vector<1x128xf32> to vector<8x128xf32>
    %14 = arith.cmpf olt, %7, %13 : vector<8x128xf32>
    %15 = arith.andi %12, %14 : vector<8x128xi1>
    %16 = vector.broadcast %1 : vector<1x128xf32> to vector<8x128xf32>
    %17 = arith.cmpf oge, %7, %16 : vector<8x128xf32>
    %cst_11 = arith.constant 0.000000e+00 : f32
    %18 = vector.broadcast %cst_11 : f32 to vector<8x128xf32>
    %19 = arith.cmpf olt, %7, %18 : vector<8x128xf32>
    %20 = arith.andi %17, %19 : vector<8x128xi1>
    %cst_12 = arith.constant 0.000000e+00 : f32
    %21 = vector.broadcast %cst_12 : f32 to vector<8x128xf32>
    %22 = arith.cmpf oge, %7, %21 : vector<8x128xf32>
    %23 = vector.broadcast %2 : vector<1x128xf32> to vector<8x128xf32>
    %24 = arith.cmpf olt, %7, %23 : vector<8x128xf32>
    %25 = arith.andi %22, %24 : vector<8x128xi1>
    %26 = vector.broadcast %2 : vector<1x128xf32> to vector<8x128xf32>
    %27 = arith.cmpf oge, %7, %26 : vector<8x128xf32>
    %28 = vector.broadcast %3 : vector<1x128xf32> to vector<8x128xf32>
    %29 = arith.cmpf olt, %7, %28 : vector<8x128xf32>
    %30 = arith.andi %27, %29 : vector<8x128xi1>
    %31 = vector.broadcast %0 : vector<1x128xf32> to vector<8x128xf32>
    %32 = arith.subf %7, %31 : vector<8x128xf32>
    %33 = vector.broadcast %4 : vector<1x128xf32> to vector<8x128xf32>
    %34 = arith.mulf %32, %33 : vector<8x128xf32>
    %35 = arith.mulf %8, %34 : vector<8x128xf32>
    %36 = arith.addf %10, %35 : vector<8x128xf32>
    %37 = vector.broadcast %5 : vector<1x128xf32> to vector<8x128xf32>
    %38 = arith.mulf %7, %37 : vector<8x128xf32>
    %39 = arith.mulf %10, %38 : vector<8x128xf32>
    %40 = arith.addf %8, %39 : vector<8x128xf32>
    %41 = vector.broadcast %3 : vector<1x128xf32> to vector<8x128xf32>
    %42 = arith.subf %7, %41 : vector<8x128xf32>
    %43 = vector.broadcast %6 : vector<1x128xf32> to vector<8x128xf32>
    %44 = arith.mulf %42, %43 : vector<8x128xf32>
    %45 = arith.mulf %8, %44 : vector<8x128xf32>
    %46 = arith.addf %10, %45 : vector<8x128xf32>
    %47 = arith.select %30, %46, %10 : vector<8x128xi1>, vector<8x128xf32>
    %48 = arith.select %25, %40, %47 : vector<8x128xi1>, vector<8x128xf32>
    %49 = arith.select %15, %36, %48 : vector<8x128xi1>, vector<8x128xf32>
    %cst_13 = arith.constant -0.105360515 : f32
    %cst_14 = arith.constant -0.105360515 : f32
    %50 = vector.broadcast %cst_13 : f32 to vector<8x128xf32>
    %51 = vector.broadcast %cst_14 : f32 to vector<8x128xf32>
    %52 = arith.select %25, %50, %51 : vector<8x128xi1>, vector<8x128xf32>
    %53 = math.log %49 : vector<8x128xf32>
    %54 = arith.subf %52, %53 : vector<8x128xf32>
    %cst_15 = arith.constant 0.000000e+00 : f32
    %55 = vector.broadcast %cst_15 : f32 to vector<8x128xf32>
    %56 = arith.maximumf %55, %54 : vector<8x128xf32>
    %57 = tpu.iota {dimensions = array<i32: 0>} : vector<8x128xi32>
    %c8_i32 = arith.constant 8 : i32
    %58 = arith.muli %arg0, %c8_i32 : i32
    %59 = vector.broadcast %58 : i32 to vector<8x128xi32>
    %60 = arith.addi %57, %59 : vector<8x128xi32>
    %61 = tpu.iota {dimensions = array<i32: 1>} : vector<8x128xi32>
    %c128_i32 = arith.constant 128 : i32
    %62 = vector.broadcast %c128_i32 : i32 to vector<8x128xi32>
    %63 = arith.muli %60, %62 : vector<8x128xi32>
    %64 = arith.addi %63, %61 : vector<8x128xi32>
    %c256_i32 = arith.constant 256 : i32
    %65 = vector.broadcast %c256_i32 : i32 to vector<8x128xi32>
    %66 = arith.cmpi sge, %64, %65 : vector<8x128xi32>
    %67 = arith.ori %20, %66 : vector<8x128xi1>
    %cst_16 = arith.constant 0.000000e+00 : f32
    %68 = vector.broadcast %cst_16 : f32 to vector<8x128xf32>
    %69 = arith.select %67, %68, %56 : vector<8x128xi1>, vector<8x128xf32>
    %70 = vector.shape_cast %69 : vector<8x128xf32> to vector<1x8x128xf32>
    %cst_17 = arith.constant dense<0.000000e+00> : vector<8x128xf32>
    %71 = vector.multi_reduction <add>, %70, %cst_17 [0] : vector<1x8x128xf32> to vector<8x128xf32>
    %72 = vector.shape_cast %71 : vector<8x128xf32> to vector<1x8x128xf32>
    %c0_18 = arith.constant 0 : index
    %c0_19 = arith.constant 0 : index
    %c0_20 = arith.constant 0 : index
    %73 = vector.load %arg4[%c0_18, %c0_19, %c0_20] : memref<1x8x128xf32, #tpu.memory_space<vmem>>, vector<1x8x128xf32>
    tpu.vector_store %arg4[%c0_18, %c0_19, %c0_20], %72 {strides = array<i32>} : memref<1x8x128xf32, #tpu.memory_space<vmem>>, vector<1x8x128xf32>,
    return
  }
  func.func @transform_0(%arg0: i32) -> (i32, i32) {
    %c0_i32 = arith.constant 0 : i32
    %c0_i32_0 = arith.constant 0 : i32
    %c0_i32_1 = arith.constant 0 : i32
    return %c0_i32, %c0_i32_0 : i32, i32
  }
  func.func @transform_1(%arg0: i32) -> (i32, i32) {
    %c0_i32 = arith.constant 0 : i32
    %c0_i32_0 = arith.constant 0 : i32
    return %arg0, %c0_i32 : i32, i32
  }
  func.func @transform_2(%arg0: i32) -> (i32, i32) {
    %c0_i32 = arith.constant 0 : i32
    %c0_i32_0 = arith.constant 0 : i32
    return %arg0, %c0_i32 : i32, i32
  }
  func.func @transform_3(%arg0: i32) -> (i32, i32, i32) {
    %c0_i32 = arith.constant 0 : i32
    %c0_i32_0 = arith.constant 0 : i32
    %c0_i32_1 = arith.constant 0 : i32
    return %arg0, %c0_i32, %c0_i32_0 : i32, i32, i32
  }
}

</mosaic_0001>

<llo_original>
// kernel: tpu_custom_call.1
$region0: #{tpu_custom_call.1}
  #allocation0 [shape = 'u32[]', space=smem, size = 0x4, offset = 0x4, fixed_abs, tag = 'smem constant byte address 0x4 - core index']
  #allocation1 [shape = 'u32[144,128]{1,0:T(1,128)}', space=vmem, size = 0x12000, scoped, tag = 'internal scratch']
  %s0 = inlined_call_operand.hbm [shape: f32[8,128], index: 0, kind: input, shape index: {}]
  %s1 = inlined_call_operand.hbm [shape: f32[8,128], index: 1, kind: input, shape index: {}]
  %s2 = inlined_call_operand.hbm [shape: f32[8,128], index: 2, kind: input, shape index: {}]
  %s3 = inlined_call_operand.hbm [shape: f32[1,8,128], index: 3, kind: output, shape index: {}]
  %s4 = sld [smem:[#allocation0]]
  $region34: #{tpu_custom_call.1} parent=0
    _
  %s6 = ssub.s32 1, %s4
  %s7 = scalar_select 0, %s6, %s4
  $region1: #{tpu_custom_call.1} parent=0
    #allocation2 [shape = 'u8[4096]{0}', space=vmem, size = 0x1000, scoped, tag = 'input window, operand 0, single buffered']
    #allocation3 [shape = 's32[1]{0}', space=sflag, size = 0x4, scoped, tag = 'scoped memory for tpu_custom_call.1']
    #allocation4 [shape = 's32[1]{0}', space=sflag, size = 0x4, scoped, tag = 'scoped memory for tpu_custom_call.1']
    #allocation5 [shape = 'u8[4096]{0}', space=vmem, size = 0x1000, scoped, tag = 'input window, operand 1, single buffered']
    #allocation6 [shape = 's32[1]{0}', space=sflag, size = 0x4, scoped, tag = 'scoped memory for tpu_custom_call.1']
    #allocation7 [shape = 'u8[4096]{0}', space=vmem, size = 0x1000, scoped, tag = 'input window, operand 2, single buffered']
    #allocation8 [shape = 'u8[4096]{0}', space=vmem, size = 0x1000, scoped, tag = 'output window, operand 0, single buffered']
    %8 = vsyncpa [#allocation3], 0
    %9 = vsyncpa [#allocation6], 0
    %10 = vsyncpa [#allocation4], 0
    // Predicated region
    $region2: #{tpu_custom_call.1} parent=1 // pred_check
      _
    $region3: #{tpu_custom_call.1} parent=1 // pred_check_branch
      %12 = sbr.rel (0) target = $region5
    $region4: #{tpu_custom_call.1} parent=1 // pred_region
      %s14 = ssub.s32 128, 128
      %15 = vsyncadd [#allocation3], %s14
      %s17 = sshll.u32 [#allocation2], 4
      %s18 = int_to_ptr.vmem [resolvable:$true] %s17
      %20 = dma.hbm_to_vmem [thread:$0]  %s0, 128, %s18, [#allocation3]
    $region5: #{tpu_custom_call.1} parent=1 // pred_fallthru
      _
    // Predicated region
    $region6: #{tpu_custom_call.1} parent=1 // pred_check
      _
    $region7: #{tpu_custom_call.1} parent=1 // pred_check_branch
      %22 = sbr.rel (0) target = $region9
    $region8: #{tpu_custom_call.1} parent=1 // pred_region
      %s24 = ssub.s32 128, 128
      %25 = vsyncadd [#allocation6], %s24
      %s27 = sshll.u32 [#allocation5], 4
      %s28 = int_to_ptr.vmem [resolvable:$true] %s27
      %30 = dma.hbm_to_vmem [thread:$0]  %s1, 128, %s28, [#allocation6]
    $region9: #{tpu_custom_call.1} parent=1 // pred_fallthru
      _
    // Predicated region
    $region10: #{tpu_custom_call.1} parent=1 // pred_check
      _
    $region11: #{tpu_custom_call.1} parent=1 // pred_check_branch
      %32 = sbr.rel (0) target = $region13
    $region12: #{tpu_custom_call.1} parent=1 // pred_region
      %s34 = ssub.s32 128, 128
      %35 = vsyncadd [#allocation6], %s34
      %s37 = sshll.u32 [#allocation7], 4
      %s38 = int_to_ptr.vmem [resolvable:$true] %s37
      %40 = dma.hbm_to_vmem [thread:$0]  %s2, 128, %s38, [#allocation6]
    $region13: #{tpu_custom_call.1} parent=1 // pred_fallthru
      _
    // Predicated region
    $region14: #{tpu_custom_call.1} parent=1 // pred_check
      _
    $region15: #{tpu_custom_call.1} parent=1 // pred_check_branch
      %42 = sbr.rel (0) target = $region17
    $region16: #{tpu_custom_call.1} parent=1 // pred_region
      %43 = dma.done [#allocation3], 128
    $region17: #{tpu_custom_call.1} parent=1 // pred_fallthru
      _
    // Predicated region
    $region18: #{tpu_custom_call.1} parent=1 // pred_check
      _
    $region19: #{tpu_custom_call.1} parent=1 // pred_check_branch
      %45 = sbr.rel (0) target = $region21
    $region20: #{tpu_custom_call.1} parent=1 // pred_region
      %46 = dma.done [#allocation6], 128
    $region21: #{tpu_custom_call.1} parent=1 // pred_fallthru
      _
    // Predicated region
    $region22: #{tpu_custom_call.1} parent=1 // pred_check
      _
    $region23: #{tpu_custom_call.1} parent=1 // pred_check_branch
      %48 = sbr.rel (0) target = $region25
    $region24: #{tpu_custom_call.1} parent=1 // pred_region
      %49 = dma.done [#allocation6], 128
    $region25: #{tpu_custom_call.1} parent=1 // pred_fallthru
      _
    %v50 = vld [vmem:[#allocation2] sm:$0x1]
    %v51 = vld [vmem:[#allocation2 + $0x1] sm:$0x1]
    %v52 = vld [vmem:[#allocation2 + $0x2] sm:$0x1]
    %v53 = vld [vmem:[#allocation2 + $0x3] sm:$0x1]
    %v54 = vld [vmem:[#allocation2 + $0x4] sm:$0x1]
    %v55 = vld [vmem:[#allocation2 + $0x5] sm:$0x1]
    %v56 = vld [vmem:[#allocation2 + $0x6] sm:$0x1]
    %v57 = vld [vmem:[#allocation5] sm:$0xff]
    %v58 = vld [vmem:[#allocation7] sm:$0xff]
    %v59 = vsub.f32 1.0, %v58
    %v60 = vlaneseq
    %v61 = vshrl.u32 %v60, 7
    %v62 = vsub.s32 0, %v61
    %v63 = vrot.slane %v50, %v62
    %vm64 = vcmp.ge.f32.partialorder %v57, %v63
    %v65 = vlaneseq
    %v66 = vshrl.u32 %v65, 7
    %v67 = vsub.s32 0, %v66
    %v68 = vrot.slane %v51, %v67
    %vm69 = vcmp.lt.f32.partialorder %v57, %v68
    %vm70 = vmand %vm64, %vm69
    %vm71 = vcmp.ge.f32.partialorder %v57, %v68
    %vm72 = vcmp.lt.f32.partialorder %v57, 0.0
    %vm73 = vmand %vm71, %vm72
    %vm74 = vcmp.ge.f32.partialorder %v57, 0.0
    %v75 = vlaneseq
    %v76 = vshrl.u32 %v75, 7
    %v77 = vsub.s32 0, %v76
    %v78 = vrot.slane %v52, %v77
    %vm79 = vcmp.lt.f32.partialorder %v57, %v78
    %vm80 = vmand %vm74, %vm79
    %vm81 = vcmp.ge.f32.partialorder %v57, %v78
    %v82 = vlaneseq
    %v83 = vshrl.u32 %v82, 7
    %v84 = vsub.s32 0, %v83
    %v85 = vrot.slane %v53, %v84
    %vm86 = vcmp.lt.f32.partialorder %v57, %v85
    %vm87 = vmand %vm81, %vm86
    %v88 = vsub.f32 %v57, %v63
    %v89 = vlaneseq
    %v90 = vshrl.u32 %v89, 7
    %v91 = vsub.s32 0, %v90
    %v92 = vrot.slane %v54, %v91
    %v93 = vmul.f32 %v88, %v92
    %v94 = vmul.f32 %v58, %v93
    %v95 = vadd.f32 %v59, %v94
    %v96 = vlaneseq
    %v97 = vshrl.u32 %v96, 7
    %v98 = vsub.s32 0, %v97
    %v99 = vrot.slane %v55, %v98
    %v100 = vmul.f32 %v57, %v99
    %v101 = vmul.f32 %v59, %v100
    %v102 = vadd.f32 %v58, %v101
    %v103 = vsub.f32 %v57, %v85
    %v104 = vlaneseq
    %v105 = vshrl.u32 %v104, 7
    %v106 = vsub.s32 0, %v105
    %v107 = vrot.slane %v56, %v106
    %v108 = vmul.f32 %v103, %v107
    %v109 = vmul.f32 %v58, %v108
    %v110 = vadd.f32 %v59, %v109
    %v111 = vsel %vm87, %v110, %v59
    %v112 = vsel %vm80, %v102, %v111
    %v113 = vsel %vm70, %v95, %v112
    %v114 = vlog2.pop %v113
    %v115 = vmul.f32 %v114, 0.6931472
    %v116 = vsub.f32 -0.105360515, %v115
    %v117 = vmax.f32 %v116, 0.0
    %v118 = vlaneseq
    %v119 = vshrl.u32 %v118, 7
    %s120 = smul.u32 0, 8
    %v121 = vstv %s120
    %v122 = vadd.s32 %v119, %v121
    %v123 = vlaneseq
    %v124 = vand.u32 %v123, 127
    %v125 = vmul.u32 %v122, 128
    %v126 = vadd.s32 %v125, %v124
    %vm127 = vcmp.ge.s32.totalorder %v126, 256
    %vm128 = vmor %vm73, %vm127
    %v129 = vsel %vm128, 0.0, %v117
    %v130 = vadd.f32 %v129, 0.0
    %131 = vst [vmem:[#allocation8] sm:$0xff] %v130
    // Predicated region
    $region26: #{tpu_custom_call.1} parent=1 // pred_check
      _
    $region27: #{tpu_custom_call.1} parent=1 // pred_check_branch
      %133 = sbr.rel (0) target = $region29
    $region28: #{tpu_custom_call.1} parent=1 // pred_region
      %s135 = ssub.s32 128, 128
      %136 = vsyncadd [#allocation4], %s135
      %s138 = sshll.u32 [#allocation8], 4
      %s139 = int_to_ptr.vmem [resolvable:$true] %s138
      %141 = dma.vmem_to_hbm [thread:$0]  %s139, 128, %s3, [#allocation4]
    $region29: #{tpu_custom_call.1} parent=1 // pred_fallthru
      _
    // Predicated region
    $region30: #{tpu_custom_call.1} parent=1 // pred_check
      _
    $region31: #{tpu_custom_call.1} parent=1 // pred_check_branch
      %143 = sbr.rel (0) target = $region33
    $region32: #{tpu_custom_call.1} parent=1 // pred_region
      %144 = dma.done [#allocation4], 128
    $region33: #{tpu_custom_call.1} parent=1 // pred_fallthru
      _
    %145 = vsyncpa [#allocation3], 1
    %146 = vsyncpa [#allocation6], 1
    %147 = vsyncpa [#allocation4], 1

</llo_original>
